<compile_context>
chip_gen: v5e
topology: v5e:2x2
jax: 0.10.0
libtpu: 0.0.40
codegen_flags: <defaults>
</compile_context>

<pallas_src>
import functools

import jax
import jax.numpy as jnp
import numpy as np
from jax.experimental import pallas as pl
from jax.experimental.pallas import tpu as pltpu


def _round_up(x, m):
    return ((x + m - 1) // m) * m


def _gaussian_conv_kernel(gk_ref, x_ref, out_ref, *, taps, pad, l_in, l_out_pad):
    """One grid step: (TN, L) rows of x -> (TN, L_out_pad) rows of output.

    gk_ref  : SMEM (F,)            precomputed Gaussian taps (f32 scalars)
    x_ref   : VMEM (TN, L)         unpadded input rows
    out_ref : VMEM (TN, L_out_pad) lane-dense output tile
    """
    tn = x_ref.shape[0]
    xv = x_ref[...].astype(jnp.float32)

    # Assemble the zero halo in VMEM (no extra HBM pad pass). The right halo is
    # wide enough that every tap slice stays in range for the lane-padded
    # output width; the extra output lanes are sliced off in the wrapper.
    xp_width = (taps - 1) + l_out_pad
    right_w = xp_width - pad - l_in
    parts = []
    if pad > 0:
        parts.append(jnp.zeros((tn, pad), jnp.float32))
    parts.append(xv)
    if right_w > 0:
        parts.append(jnp.zeros((tn, right_w), jnp.float32))
    xp = jnp.concatenate(parts, axis=1) if len(parts) > 1 else xv

    # Shift-and-accumulate over the (small, static) tap count. Tap weights are
    # SMEM scalars, so each multiply uses a scalar operand -- no lane
    # extract / broadcast per tap.
    acc = jnp.zeros((tn, l_out_pad), jnp.float32)
    for k in range(taps):                      # static unroll; F is compile-time
        acc = acc + gk_ref[k] * xp[:, k:k + l_out_pad]
    out_ref[...] = acc.astype(out_ref.dtype)


def gaussian_conv(x, alpha, beta, node_features, *, row_tile=256):
    """x: (N, L) float32; alpha, beta: scalars. Returns (N, L_out) float32."""
    N, L = x.shape
    F = int(node_features)
    pad = (F - 1) // 2
    L_out = L + 2 * pad - F + 1
    L_out_pad = max(128, _round_up(L_out, 128))      # lane-dense output stores

    # Precompute the F taps once (they depend only on alpha/beta); the module's
    # order is preserved: normalize, then clamp to 1e-10.
    idx = jnp.arange(F, dtype=jnp.float32)
    gk = jnp.exp(-(idx - jnp.float32(alpha)) ** 2 / (2.0 * jnp.float32(beta) ** 2))
    gk = gk / jnp.sum(gk)
    gk = jnp.maximum(gk, 1e-10)

    # Row tile: as large as practical (amortizes ~0.35us/step and makes big
    # DMAs), multiple of 8, capped so the double-buffered working set stays
    # well inside VMEM (v7x has only 64 MiB physical).
    bytes_per_row = 4 * (2 * L + 2 * L_out_pad + (F - 1 + L_out_pad) + L_out_pad)
    vmem_budget = 24 * 1024 * 1024
    cap = max(8, (vmem_budget // max(bytes_per_row, 1)) // 8 * 8)
    tn = min(row_tile, _round_up(N, 8), cap)
    tn = max(8, (tn // 8) * 8)

    # Partial last block is fine: OOB input rows are garbage-in, OOB output
    # rows are dropped; rows are independent so nothing contaminates.
    grid = (pl.cdiv(N, tn),)

    kernel = functools.partial(
        _gaussian_conv_kernel, taps=F, pad=pad, l_in=L, l_out_pad=L_out_pad)

    out = pl.pallas_call(
        kernel,
        out_shape=jax.ShapeDtypeStruct((N, L_out_pad), jnp.float32),
        grid_spec=pltpu.PrefetchScalarGridSpec(
            num_scalar_prefetch=0,
            grid=grid,
            in_specs=[
                pl.BlockSpec(memory_space=pltpu.MemorySpace.SMEM),   # taps (F,)
                pl.BlockSpec((tn, L), lambda i: (i, 0)),             # x rows, unpadded
            ],
            out_specs=pl.BlockSpec((tn, L_out_pad), lambda i: (i, 0)),
        ),
        compiler_params=pltpu.CompilerParams(
            dimension_semantics=("parallel",),   # rows shard across v7x TCs
        ),
    )(gk, x.astype(jnp.float32))

    return out[:, :L_out]


def _reference(x, alpha, beta, node_features):
    F = node_features
    idx = jnp.arange(F, dtype=jnp.float32)
    gk = jnp.exp(-(idx - alpha) ** 2 / (2.0 * beta ** 2))
    gk = gk / jnp.sum(gk)
    gk = jnp.maximum(gk, 1e-10)
    pad = (F - 1) // 2
    L = x.shape[1]
    L_out = L + 2 * pad - F + 1
    xp = jnp.pad(x, ((0, 0), (pad, pad)))
    out = jnp.zeros((x.shape[0], L_out), jnp.float32)
    for k in range(F):
        out = out + gk[k] * xp[:, k:k + L_out]
    return out


if __name__ == "__main__":
    key = jax.random.PRNGKey(0)
    N, L = 8, 16
    node_features = 16           # kernel size == node_features, as in the module
    initial_alpha = 7.5          # deterministic scalar parameter init
    initial_beta = 2.0

    x = jax.random.normal(key, (N, L), dtype=jnp.float32)

    y = gaussian_conv(x, initial_alpha, initial_beta, node_features)
    y = jax.block_until_ready(y)

    y_ref = _reference(x, initial_alpha, initial_beta, node_features)
    assert y.shape == y_ref.shape, (y.shape, y_ref.shape)
    assert np.allclose(np.asarray(y), np.asarray(y_ref), rtol=1e-5, atol=1e-5)

    print("KERNEL_OK")
</pallas_src>

<mosaic_0001>
module attributes {stable_mosaic.version = 11 : i64} {
  func.func @_gaussian_conv_kernel(%arg0: i32, %arg1: memref<16xf32, #tpu.memory_space<smem>>, %arg2: memref<8x16xf32, #tpu.memory_space<vmem>>, %arg3: memref<8x128xf32, #tpu.memory_space<vmem>>) attributes {dimension_semantics = [#tpu.dimension_semantics<parallel>], iteration_bounds = array<i64: 1>, scalar_prefetch = 0 : i64, scratch_operands = 0 : i64, tpu.core_type = #tpu.core_type<tc>, window_params = [{transform_indices = @transform_0, window_bounds = array<i64: 16>}, {transform_indices = @transform_1, window_bounds = array<i64: 8, 16>}, {transform_indices = @transform_2, window_bounds = array<i64: 8, 128>}]} {
    %c0 = arith.constant 0 : index
    %c0_0 = arith.constant 0 : index
    %0 = vector.load %arg2[%c0, %c0_0] : memref<8x16xf32, #tpu.memory_space<vmem>>, vector<8x16xf32>
    %cst = arith.constant 0.000000e+00 : f32
    %1 = vector.broadcast %cst : f32 to vector<8x7xf32>
    %cst_1 = arith.constant 0.000000e+00 : f32
    %2 = vector.broadcast %cst_1 : f32 to vector<8x120xf32>
    %3 = tpu.concatenate %1, %0, %2 in 1 : vector<8x7xf32>, vector<8x16xf32>, vector<8x120xf32> -> vector<8x143xf32>
    %cst_2 = arith.constant 0.000000e+00 : f32
    %4 = vector.broadcast %cst_2 : f32 to vector<8x128xf32>
    %c0_3 = arith.constant 0 : index
    %5 = memref.load %arg1[%c0_3] : memref<16xf32, #tpu.memory_space<smem>>
    %6 = vector.extract_strided_slice %3 {offsets = [0, 0], sizes = [8, 128], strides = [1, 1]} : vector<8x143xf32> to vector<8x128xf32>
    %7 = vector.broadcast %5 : f32 to vector<8x128xf32>
    %8 = arith.mulf %7, %6 : vector<8x128xf32>
    %9 = arith.addf %4, %8 : vector<8x128xf32>
    %c1 = arith.constant 1 : index
    %10 = memref.load %arg1[%c1] : memref<16xf32, #tpu.memory_space<smem>>
    %11 = vector.extract_strided_slice %3 {offsets = [0, 1], sizes = [8, 128], strides = [1, 1]} : vector<8x143xf32> to vector<8x128xf32>
    %12 = vector.broadcast %10 : f32 to vector<8x128xf32>
    %13 = arith.mulf %12, %11 : vector<8x128xf32>
    %14 = arith.addf %9, %13 : vector<8x128xf32>
    %c2 = arith.constant 2 : index
    %15 = memref.load %arg1[%c2] : memref<16xf32, #tpu.memory_space<smem>>
    %16 = vector.extract_strided_slice %3 {offsets = [0, 2], sizes = [8, 128], strides = [1, 1]} : vector<8x143xf32> to vector<8x128xf32>
    %17 = vector.broadcast %15 : f32 to vector<8x128xf32>
    %18 = arith.mulf %17, %16 : vector<8x128xf32>
    %19 = arith.addf %14, %18 : vector<8x128xf32>
    %c3 = arith.constant 3 : index
    %20 = memref.load %arg1[%c3] : memref<16xf32, #tpu.memory_space<smem>>
    %21 = vector.extract_strided_slice %3 {offsets = [0, 3], sizes = [8, 128], strides = [1, 1]} : vector<8x143xf32> to vector<8x128xf32>
    %22 = vector.broadcast %20 : f32 to vector<8x128xf32>
    %23 = arith.mulf %22, %21 : vector<8x128xf32>
    %24 = arith.addf %19, %23 : vector<8x128xf32>
    %c4 = arith.constant 4 : index
    %25 = memref.load %arg1[%c4] : memref<16xf32, #tpu.memory_space<smem>>
    %26 = vector.extract_strided_slice %3 {offsets = [0, 4], sizes = [8, 128], strides = [1, 1]} : vector<8x143xf32> to vector<8x128xf32>
    %27 = vector.broadcast %25 : f32 to vector<8x128xf32>
    %28 = arith.mulf %27, %26 : vector<8x128xf32>
    %29 = arith.addf %24, %28 : vector<8x128xf32>
    %c5 = arith.constant 5 : index
    %30 = memref.load %arg1[%c5] : memref<16xf32, #tpu.memory_space<smem>>
    %31 = vector.extract_strided_slice %3 {offsets = [0, 5], sizes = [8, 128], strides = [1, 1]} : vector<8x143xf32> to vector<8x128xf32>
    %32 = vector.broadcast %30 : f32 to vector<8x128xf32>
    %33 = arith.mulf %32, %31 : vector<8x128xf32>
    %34 = arith.addf %29, %33 : vector<8x128xf32>
    %c6 = arith.constant 6 : index
    %35 = memref.load %arg1[%c6] : memref<16xf32, #tpu.memory_space<smem>>
    %36 = vector.extract_strided_slice %3 {offsets = [0, 6], sizes = [8, 128], strides = [1, 1]} : vector<8x143xf32> to vector<8x128xf32>
    %37 = vector.broadcast %35 : f32 to vector<8x128xf32>
    %38 = arith.mulf %37, %36 : vector<8x128xf32>
    %39 = arith.addf %34, %38 : vector<8x128xf32>
    %c7 = arith.constant 7 : index
    %40 = memref.load %arg1[%c7] : memref<16xf32, #tpu.memory_space<smem>>
    %41 = vector.extract_strided_slice %3 {offsets = [0, 7], sizes = [8, 128], strides = [1, 1]} : vector<8x143xf32> to vector<8x128xf32>
    %42 = vector.broadcast %40 : f32 to vector<8x128xf32>
    %43 = arith.mulf %42, %41 : vector<8x128xf32>
    %44 = arith.addf %39, %43 : vector<8x128xf32>
    %c8 = arith.constant 8 : index
    %45 = memref.load %arg1[%c8] : memref<16xf32, #tpu.memory_space<smem>>
    %46 = vector.extract_strided_slice %3 {offsets = [0, 8], sizes = [8, 128], strides = [1, 1]} : vector<8x143xf32> to vector<8x128xf32>
    %47 = vector.broadcast %45 : f32 to vector<8x128xf32>
    %48 = arith.mulf %47, %46 : vector<8x128xf32>
    %49 = arith.addf %44, %48 : vector<8x128xf32>
    %c9 = arith.constant 9 : index
    %50 = memref.load %arg1[%c9] : memref<16xf32, #tpu.memory_space<smem>>
    %51 = vector.extract_strided_slice %3 {offsets = [0, 9], sizes = [8, 128], strides = [1, 1]} : vector<8x143xf32> to vector<8x128xf32>
    %52 = vector.broadcast %50 : f32 to vector<8x128xf32>
    %53 = arith.mulf %52, %51 : vector<8x128xf32>
    %54 = arith.addf %49, %53 : vector<8x128xf32>
    %c10 = arith.constant 10 : index
    %55 = memref.load %arg1[%c10] : memref<16xf32, #tpu.memory_space<smem>>
    %56 = vector.extract_strided_slice %3 {offsets = [0, 10], sizes = [8, 128], strides = [1, 1]} : vector<8x143xf32> to vector<8x128xf32>
    %57 = vector.broadcast %55 : f32 to vector<8x128xf32>
    %58 = arith.mulf %57, %56 : vector<8x128xf32>
    %59 = arith.addf %54, %58 : vector<8x128xf32>
    %c11 = arith.constant 11 : index
    %60 = memref.load %arg1[%c11] : memref<16xf32, #tpu.memory_space<smem>>
    %61 = vector.extract_strided_slice %3 {offsets = [0, 11], sizes = [8, 128], strides = [1, 1]} : vector<8x143xf32> to vector<8x128xf32>
    %62 = vector.broadcast %60 : f32 to vector<8x128xf32>
    %63 = arith.mulf %62, %61 : vector<8x128xf32>
    %64 = arith.addf %59, %63 : vector<8x128xf32>
    %c12 = arith.constant 12 : index
    %65 = memref.load %arg1[%c12] : memref<16xf32, #tpu.memory_space<smem>>
    %66 = vector.extract_strided_slice %3 {offsets = [0, 12], sizes = [8, 128], strides = [1, 1]} : vector<8x143xf32> to vector<8x128xf32>
    %67 = vector.broadcast %65 : f32 to vector<8x128xf32>
    %68 = arith.mulf %67, %66 : vector<8x128xf32>
    %69 = arith.addf %64, %68 : vector<8x128xf32>
    %c13 = arith.constant 13 : index
    %70 = memref.load %arg1[%c13] : memref<16xf32, #tpu.memory_space<smem>>
    %71 = vector.extract_strided_slice %3 {offsets = [0, 13], sizes = [8, 128], strides = [1, 1]} : vector<8x143xf32> to vector<8x128xf32>
    %72 = vector.broadcast %70 : f32 to vector<8x128xf32>
    %73 = arith.mulf %72, %71 : vector<8x128xf32>
    %74 = arith.addf %69, %73 : vector<8x128xf32>
    %c14 = arith.constant 14 : index
    %75 = memref.load %arg1[%c14] : memref<16xf32, #tpu.memory_space<smem>>
    %76 = vector.extract_strided_slice %3 {offsets = [0, 14], sizes = [8, 128], strides = [1, 1]} : vector<8x143xf32> to vector<8x128xf32>
    %77 = vector.broadcast %75 : f32 to vector<8x128xf32>
    %78 = arith.mulf %77, %76 : vector<8x128xf32>
    %79 = arith.addf %74, %78 : vector<8x128xf32>
    %c15 = arith.constant 15 : index
    %80 = memref.load %arg1[%c15] : memref<16xf32, #tpu.memory_space<smem>>
    %81 = vector.extract_strided_slice %3 {offsets = [0, 15], sizes = [8, 128], strides = [1, 1]} : vector<8x143xf32> to vector<8x128xf32>
    %82 = vector.broadcast %80 : f32 to vector<8x128xf32>
    %83 = arith.mulf %82, %81 : vector<8x128xf32>
    %84 = arith.addf %79, %83 : vector<8x128xf32>
    %c0_4 = arith.constant 0 : index
    %c0_5 = arith.constant 0 : index
    %85 = vector.load %arg3[%c0_4, %c0_5] : memref<8x128xf32, #tpu.memory_space<vmem>>, vector<8x128xf32>
    tpu.vector_store %arg3[%c0_4, %c0_5], %84 {strides = array<i32>} : memref<8x128xf32, #tpu.memory_space<vmem>>, vector<8x128xf32>,
    return
  }
  func.func @transform_0(%arg0: i32) -> i32 {
    %c0_i32 = arith.constant 0 : i32
    %c0_i32_0 = arith.constant 0 : i32
    return %c0_i32 : i32
  }
  func.func @transform_1(%arg0: i32) -> (i32, i32) {
    %c0_i32 = arith.constant 0 : i32
    %c0_i32_0 = arith.constant 0 : i32
    return %arg0, %c0_i32 : i32, i32
  }
  func.func @transform_2(%arg0: i32) -> (i32, i32) {
    %c0_i32 = arith.constant 0 : i32
    %c0_i32_0 = arith.constant 0 : i32
    return %arg0, %c0_i32 : i32, i32
  }
}

</mosaic_0001>

<llo_original>
// kernel: tpu_custom_call.1
$region0: #{tpu_custom_call.1}
  #allocation0 [shape = 'u32[]', space=smem, size = 0x4, offset = 0x4, fixed_abs, tag = 'smem constant byte address 0x4 - core index']
  #allocation1 [shape = 'u32[72,128]{1,0:T(1,128)}', space=vmem, size = 0x9000, scoped, tag = 'internal scratch']
  %s0 = inlined_call_operand.hbm [shape: f32[16], index: 0, kind: input, shape index: {}]
  %s1 = inlined_call_operand.hbm [shape: f32[8,16], index: 1, kind: input, shape index: {}]
  %s2 = inlined_call_operand.hbm [shape: f32[8,128], index: 2, kind: output, shape index: {}]
  %s3 = sld [smem:[#allocation0]]
  $region26: #{tpu_custom_call.1} parent=0
    _
  %s5 = ssub.s32 1, %s3
  %s6 = scalar_select 0, %s5, %s3
  $region1: #{tpu_custom_call.1} parent=0
    #allocation2 [shape = 'u8[512]{0}', space=smem, size = 0x200, scoped, tag = 'input window, operand 0, single buffered']
    #allocation3 [shape = 's32[1]{0}', space=sflag, size = 0x4, scoped, tag = 'scoped memory for tpu_custom_call.1']
    #allocation4 [shape = 's32[1]{0}', space=sflag, size = 0x4, scoped, tag = 'scoped memory for tpu_custom_call.1']
    #allocation5 [shape = 's32[1]{0}', space=sflag, size = 0x4, scoped, tag = 'scoped memory for tpu_custom_call.1']
    #allocation6 [shape = 'u8[4096]{0}', space=vmem, size = 0x1000, scoped, tag = 'input window, operand 1, single buffered']
    #allocation7 [shape = 'u8[4096]{0}', space=vmem, size = 0x1000, scoped, tag = 'output window, operand 0, single buffered']
    %7 = vsyncpa [#allocation5], 0
    %8 = vsyncpa [#allocation3], 0
    %9 = vsyncpa [#allocation4], 0
    // Predicated region
    $region2: #{tpu_custom_call.1} parent=1 // pred_check
      _
    $region3: #{tpu_custom_call.1} parent=1 // pred_check_branch
      %11 = sbr.rel (0) target = $region5
    $region4: #{tpu_custom_call.1} parent=1 // pred_region
      %13 = vsyncadd [#allocation5], 0
      %s15 = sshll.u32 %s0, 4
      %s16 = int_to_ptr.hbm [resolvable:$true] %s15
      %18 = dma.hbm_to_smem %s16, 16, [#allocation2], [#allocation5]
    $region5: #{tpu_custom_call.1} parent=1 // pred_fallthru
      _
    // Predicated region
    $region6: #{tpu_custom_call.1} parent=1 // pred_check
      _
    $region7: #{tpu_custom_call.1} parent=1 // pred_check_branch
      %20 = sbr.rel (0) target = $region9
    $region8: #{tpu_custom_call.1} parent=1 // pred_region
      %22 = vsyncadd [#allocation3], 0
      %s24 = sshll.u32 %s1, 4
      %s25 = int_to_ptr.hbm [resolvable:$true] %s24
      %s26 = sshll.u32 [#allocation6], 4
      %s27 = int_to_ptr.vmem [resolvable:$true] %s26
      %29 = dma.hbm_to_vmem [thread:$0]  %s25, 128, %s27, [#allocation3]
    $region9: #{tpu_custom_call.1} parent=1 // pred_fallthru
      _
    // Predicated region
    $region10: #{tpu_custom_call.1} parent=1 // pred_check
      _
    $region11: #{tpu_custom_call.1} parent=1 // pred_check_branch
      %31 = sbr.rel (0) target = $region13
    $region12: #{tpu_custom_call.1} parent=1 // pred_region
      %33 = dma.done [#allocation5], 16
    $region13: #{tpu_custom_call.1} parent=1 // pred_fallthru
      _
    // Predicated region
    $region14: #{tpu_custom_call.1} parent=1 // pred_check
      _
    $region15: #{tpu_custom_call.1} parent=1 // pred_check_branch
      %35 = sbr.rel (0) target = $region17
    $region16: #{tpu_custom_call.1} parent=1 // pred_region
      %37 = dma.done [#allocation3], 128
    $region17: #{tpu_custom_call.1} parent=1 // pred_fallthru
      _
    %38 = sfence
    %v39 = vld [vmem:[#allocation6] sm:$0xff]
    %41 = vrot.lane.b32.xlu0 %v39, 7
    %v42 = vpop.permute.xlu0 %41
    %vm44 = vcmask 56320
    %v45 = vsel %vm44, 0.0, %v42
    %vm46 = vcmask 187392
    %v47 = vsel %vm46, %v45, 0.0
    %s48 = sld [smem:[#allocation2]]
    %v49 = vstv %s48
    %v50 = vmul.f32 %v49, %v47
    %v51 = vadd.f32 %v50, 0.0
    %s52 = sld [smem:[#allocation2 + $0x1]]
    %v53 = vstv %s52
    %v54 = vmul.f32 %v53, %v47
    %v55 = vmul.f32 %v53, 0.0
    %58 = vrot.lane.b32.xlu0 %v54, 127
    %v59 = vpop.permute.xlu0 %58
    %60 = vrot.lane.b32.xlu0 %v55, 127
    %v61 = vpop.permute.xlu0 %60
    %vm62 = vcmask 1039360
    %v63 = vsel %vm62, %v59, %v61
    %v65 = vadd.f32 %v51, %v63
    %s66 = sld [smem:[#allocation2 + $0x2]]
    %v67 = vstv %s66
    %v68 = vmul.f32 %v67, %v47
    %v69 = vmul.f32 %v67, 0.0
    %72 = vrot.lane.b32.xlu0 %v68, 126
    %v73 = vpop.permute.xlu0 %72
    %74 = vrot.lane.b32.xlu0 %v69, 126
    %v75 = vpop.permute.xlu0 %74
    %vm76 = vcmask 1031168
    %v77 = vsel %vm76, %v73, %v75
    %v79 = vadd.f32 %v65, %v77
    %s80 = sld [smem:[#allocation2 + $0x3]]
    %v81 = vstv %s80
    %v82 = vmul.f32 %v81, %v47
    %v83 = vmul.f32 %v81, 0.0
    %86 = vrot.lane.b32.xlu0 %v82, 125
    %v87 = vpop.permute.xlu0 %86
    %88 = vrot.lane.b32.xlu0 %v83, 125
    %v89 = vpop.permute.xlu0 %88
    %vm90 = vcmask 1022976
    %v91 = vsel %vm90, %v87, %v89
    %v93 = vadd.f32 %v79, %v91
    %s94 = sld [smem:[#allocation2 + $0x4]]
    %v95 = vstv %s94
    %v96 = vmul.f32 %v95, %v47
    %v97 = vmul.f32 %v95, 0.0
    %100 = vrot.lane.b32.xlu0 %v96, 124
    %v101 = vpop.permute.xlu0 %100
    %102 = vrot.lane.b32.xlu0 %v97, 124
    %v103 = vpop.permute.xlu0 %102
    %vm104 = vcmask 1014784
    %v105 = vsel %vm104, %v101, %v103
    %v107 = vadd.f32 %v93, %v105
    %s108 = sld [smem:[#allocation2 + $0x5]]
    %v109 = vstv %s108
    %v110 = vmul.f32 %v109, %v47
    %v111 = vmul.f32 %v109, 0.0
    %114 = vrot.lane.b32.xlu0 %v110, 123
    %v115 = vpop.permute.xlu0 %114
    %116 = vrot.lane.b32.xlu0 %v111, 123
    %v117 = vpop.permute.xlu0 %116
    %vm118 = vcmask 1006592
    %v119 = vsel %vm118, %v115, %v117
    %v121 = vadd.f32 %v107, %v119
    %s122 = sld [smem:[#allocation2 + $0x6]]
    %v123 = vstv %s122
    %v124 = vmul.f32 %v123, %v47
    %v125 = vmul.f32 %v123, 0.0
    %128 = vrot.lane.b32.xlu0 %v124, 122
    %v129 = vpop.permute.xlu0 %128
    %130 = vrot.lane.b32.xlu0 %v125, 122
    %v131 = vpop.permute.xlu0 %130
    %vm132 = vcmask 998400
    %v133 = vsel %vm132, %v129, %v131
    %v135 = vadd.f32 %v121, %v133
    %s136 = sld [smem:[#allocation2 + $0x7]]
    %v137 = vstv %s136
    %v138 = vmul.f32 %v137, %v47
    %v139 = vmul.f32 %v137, 0.0
    %142 = vrot.lane.b32.xlu0 %v138, 121
    %v143 = vpop.permute.xlu0 %142
    %144 = vrot.lane.b32.xlu0 %v139, 121
    %v145 = vpop.permute.xlu0 %144
    %vm146 = vcmask 990208
    %v147 = vsel %vm146, %v143, %v145
    %v149 = vadd.f32 %v135, %v147
    %s150 = sld [smem:[#allocation2 + $0x8]]
    %v151 = vstv %s150
    %v152 = vmul.f32 %v151, %v47
    %v153 = vmul.f32 %v151, 0.0
    %156 = vrot.lane.b32.xlu0 %v152, 120
    %v157 = vpop.permute.xlu0 %156
    %158 = vrot.lane.b32.xlu0 %v153, 120
    %v159 = vpop.permute.xlu0 %158
    %vm160 = vcmask 982016
    %v161 = vsel %vm160, %v157, %v159
    %v163 = vadd.f32 %v149, %v161
    %s164 = sld [smem:[#allocation2 + $0x9]]
    %v165 = vstv %s164
    %v166 = vmul.f32 %v165, %v47
    %v167 = vmul.f32 %v165, 0.0
    %170 = vrot.lane.b32.xlu0 %v166, 119
    %v171 = vpop.permute.xlu0 %170
    %172 = vrot.lane.b32.xlu0 %v167, 119
    %v173 = vpop.permute.xlu0 %172
    %vm174 = vcmask 973824
    %v175 = vsel %vm174, %v171, %v173
    %v177 = vadd.f32 %v163, %v175
    %s178 = sld [smem:[#allocation2 + $0xa]]
    %v179 = vstv %s178
    %v180 = vmul.f32 %v179, %v47
    %v181 = vmul.f32 %v179, 0.0
    %184 = vrot.lane.b32.xlu0 %v180, 118
    %v185 = vpop.permute.xlu0 %184
    %186 = vrot.lane.b32.xlu0 %v181, 118
    %v187 = vpop.permute.xlu0 %186
    %vm188 = vcmask 965632
    %v189 = vsel %vm188, %v185, %v187
    %v191 = vadd.f32 %v177, %v189
    %s192 = sld [smem:[#allocation2 + $0xb]]
    %v193 = vstv %s192
    %v194 = vmul.f32 %v193, %v47
    %v195 = vmul.f32 %v193, 0.0
    %198 = vrot.lane.b32.xlu0 %v194, 117
    %v199 = vpop.permute.xlu0 %198
    %200 = vrot.lane.b32.xlu0 %v195, 117
    %v201 = vpop.permute.xlu0 %200
    %vm202 = vcmask 957440
    %v203 = vsel %vm202, %v199, %v201
    %v205 = vadd.f32 %v191, %v203
    %s206 = sld [smem:[#allocation2 + $0xc]]
    %v207 = vstv %s206
    %v208 = vmul.f32 %v207, %v47
    %v209 = vmul.f32 %v207, 0.0
    %212 = vrot.lane.b32.xlu0 %v208, 116
    %v213 = vpop.permute.xlu0 %212
    %214 = vrot.lane.b32.xlu0 %v209, 116
    %v215 = vpop.permute.xlu0 %214
    %vm216 = vcmask 949248
    %v217 = vsel %vm216, %v213, %v215
    %v219 = vadd.f32 %v205, %v217
    %s220 = sld [smem:[#allocation2 + $0xd]]
    %v221 = vstv %s220
    %v222 = vmul.f32 %v221, %v47
    %v223 = vmul.f32 %v221, 0.0
    %226 = vrot.lane.b32.xlu0 %v222, 115
    %v227 = vpop.permute.xlu0 %226
    %228 = vrot.lane.b32.xlu0 %v223, 115
    %v229 = vpop.permute.xlu0 %228
    %vm230 = vcmask 941056
    %v231 = vsel %vm230, %v227, %v229
    %v233 = vadd.f32 %v219, %v231
    %s234 = sld [smem:[#allocation2 + $0xe]]
    %v235 = vstv %s234
    %v236 = vmul.f32 %v235, %v47
    %v237 = vmul.f32 %v235, 0.0
    %240 = vrot.lane.b32.xlu0 %v236, 114
    %v241 = vpop.permute.xlu0 %240
    %242 = vrot.lane.b32.xlu0 %v237, 114
    %v243 = vpop.permute.xlu0 %242
    %vm244 = vcmask 932864
    %v245 = vsel %vm244, %v241, %v243
    %v247 = vadd.f32 %v233, %v245
    %s248 = sld [smem:[#allocation2 + $0xf]]
    %v249 = vstv %s248
    %v250 = vmul.f32 %v249, %v47
    %v251 = vmul.f32 %v249, 0.0
    %254 = vrot.lane.b32.xlu0 %v250, 113
    %v255 = vpop.permute.xlu0 %254
    %256 = vrot.lane.b32.xlu0 %v251, 113
    %v257 = vpop.permute.xlu0 %256
    %vm258 = vcmask 924672
    %v259 = vsel %vm258, %v255, %v257
    %v261 = vadd.f32 %v247, %v259
    %262 = vst [vmem:[#allocation7] sm:$0xff] %v261
    // Predicated region
    $region18: #{tpu_custom_call.1} parent=1 // pred_check
      _
    $region19: #{tpu_custom_call.1} parent=1 // pred_check_branch
      %264 = sbr.rel (0) target = $region21
    $region20: #{tpu_custom_call.1} parent=1 // pred_region
      %266 = vsyncadd [#allocation4], 0
      %s268 = sshll.u32 [#allocation7], 4
      %s269 = int_to_ptr.vmem [resolvable:$true] %s268
      %s270 = sshll.u32 %s2, 4
      %s271 = int_to_ptr.hbm [resolvable:$true] %s270
      %273 = dma.vmem_to_hbm [thread:$0]  %s269, 128, %s271, [#allocation4]
    $region21: #{tpu_custom_call.1} parent=1 // pred_fallthru
      _
    // Predicated region
    $region22: #{tpu_custom_call.1} parent=1 // pred_check
      _
    $region23: #{tpu_custom_call.1} parent=1 // pred_check_branch
      %275 = sbr.rel (0) target = $region25
    $region24: #{tpu_custom_call.1} parent=1 // pred_region
      %277 = dma.done [#allocation4], 128
    $region25: #{tpu_custom_call.1} parent=1 // pred_fallthru
      _
    %278 = vsyncpa [#allocation3], 1
    %279 = vsyncpa [#allocation4], 1
    %280 = vsyncpa [#allocation5], 1

</llo_original>
